<compile_context>
chip_gen: v7x
topology: tpu7x:2x2x1
jax: 0.10.0
libtpu: 0.0.40
codegen_flags: <defaults>
</compile_context>

<pallas_src>
import functools

import numpy as np

import jax
import jax.numpy as jnp
from jax import lax
from jax.experimental import pallas as pl
from jax.experimental.pallas import tpu as pltpu


def shortcut_kernel(x_ref, w1_ref, b1_ref, w2_ref, b2_ref, mask_ref, o_ref, *,
                    W, compute_dtype, im2col_dtype):
    # x_ref : (Nb, C, L)   full-precision input, L = H*W padded to 128 lanes
    # w1_ref: (Cmid, C)    1x1 conv weight, BN1 scale folded (compute dtype)
    # w2_ref: (C, 9*Cmid)  3x3 conv weight, im2col layout, BN2 scale folded
    # b1_ref: (Cmid, 1), b2_ref: (C, 1)  folded BN biases (f32)
    # mask_ref: (4, L)     [w-1 valid, w+1 valid, h-1 valid, h+1 valid] 0/1
    Nb, C, L = x_ref.shape

    # Shared operands: read once per grid step, reused for all Nb images.
    w1 = w1_ref[...]
    w2 = w2_ref[...]
    b1 = b1_ref[...]
    b2 = b2_ref[...]
    mw_m1 = mask_ref[0:1, :]
    mw_p1 = mask_ref[1:2, :]
    mh_m1 = mask_ref[2:3, :]
    mh_p1 = mask_ref[3:4, :]

    for b in range(Nb):                      # static unroll over images in block
        x_img = x_ref[b]                     # (C, L) full precision (residual)

        # ---- conv1 (1x1) + folded BN1 + LeakyReLU(0.1): lane-dense MXU dot.
        y1 = jnp.dot(w1, x_img.astype(compute_dtype),
                     preferred_element_type=jnp.float32)          # (Cmid, L) f32
        y1 = y1 + b1
        y1 = jnp.where(y1 > 0, y1, 0.1 * y1)
        y1 = y1.astype(im2col_dtype)         # narrow BEFORE rolls / masks

        # ---- 3x3 im2col, two-stage: column shifts (dw) then row shifts (dh).
        # tap(dh,dw)[p] = y1[p + dh*W + dw] * border_mask; any roll wrap-around
        # lands only on masked-out lanes, so no padded scratch is needed.
        s_m1 = pltpu.roll(y1, shift=1, axis=1) * mw_m1            # dw = -1
        s_p1 = pltpu.roll(y1, shift=L - 1, axis=1) * mw_p1        # dw = +1
        cols_w = (s_m1, y1, s_p1)                                 # dw = -1, 0, +1
        taps = []
        for dh, mh in ((-1, mh_m1), (0, None), (1, mh_p1)):
            shift = (-dh * W) % L
            for sw in cols_w:
                t = sw if shift == 0 else pltpu.roll(sw, shift=shift, axis=1)
                taps.append(t if mh is None else t * mh)
        col = jnp.concatenate(taps, axis=0)                       # (9*Cmid, L)

        # ---- conv2 (3x3) + folded BN2 + LeakyReLU + residual (f32 epilogue).
        y2 = jnp.dot(w2, col, preferred_element_type=jnp.float32)  # (C, L) f32
        y2 = y2 + b2
        y2 = jnp.where(y2 > 0, y2, 0.1 * y2)
        o_ref[b] = (y2 + x_img).astype(o_ref.dtype)


def _tpu_config():
    """Best-effort (device_kind, physical VMEM bytes, is_v5e) query."""
    kind = ""
    try:
        kind = jax.devices()[0].device_kind.lower()
    except Exception:
        pass
    vmem_phys = 0
    try:
        vmem_phys = int(pltpu.get_tpu_info().vmem_capacity_bytes)
    except Exception:
        vmem_phys = 0
    if vmem_phys <= 0:
        vmem_phys = (64 << 20) if "v7" in kind else (128 << 20)
    is_v5e = any(t in kind for t in ("v5e", "v5 lite", "v5lite"))
    return kind, vmem_phys, is_v5e


def _largest_divisor_leq(n, cap):
    best = 1
    for d in range(1, n + 1):
        if n % d == 0 and d <= cap:
            best = d
    return best


def shortcut_block(x_nchw, params, *, compute_dtype=jnp.bfloat16,
                   out_dtype=jnp.float32, images_per_step=None):
    """Pallas forward of ShortcutBlock (shortcut=True). x_nchw: (N, C, H, W)."""
    w1, s1, b1, w2, s2, b2 = params
    N, C, H, W = x_nchw.shape
    Cmid = w1.shape[1]
    HW = H * W
    HWp = ((HW + 127) // 128) * 128                    # lane-dense spatial extent

    _, vmem_phys, is_v5e = _tpu_config()

    compute_dtype = jnp.dtype(compute_dtype)
    out_dtype = jnp.dtype(out_dtype)
    # v5e has no bf16 VPU: keep the roll/mask/concat stage (and the MXU-
    # irrelevant conv2 operands) in f32 there.
    if compute_dtype == jnp.dtype(jnp.float32) or is_v5e:
        im2col_dtype = jnp.dtype(jnp.float32)
    else:
        im2col_dtype = compute_dtype

    # --- input: keep full precision, NO wrapper-side cast (free NCHW reshape).
    x = x_nchw.reshape(N, C, HW)
    if HWp != HW:
        x = jnp.pad(x, ((0, 0), (0, 0), (0, HWp - HW)))

    # --- fold BN scales into conv weights; biases stay as per-channel adds.
    w1k = (s1[:, None] * w1.T).astype(compute_dtype)                  # (Cmid, C)
    w2k = (s2[:, None] *
           w2.reshape(9, Cmid, C).transpose(2, 0, 1).reshape(C, 9 * Cmid)
           ).astype(im2col_dtype)                                     # (C, 9*Cmid)
    b1k = b1.reshape(Cmid, 1).astype(jnp.float32)
    b2k = b2.reshape(C, 1).astype(jnp.float32)

    # --- static border-mask table (precomputed on host, 0/1 values).
    p = np.arange(HWp)
    h_idx, w_idx = p // W, p % W
    in_img = p < HW
    masks_np = np.stack([in_img & (w_idx >= 1),
                         in_img & (w_idx <= W - 2),
                         in_img & (h_idx >= 1),
                         in_img & (h_idx <= H - 2)]).astype(np.float32)
    masks = jnp.asarray(masks_np, dtype=im2col_dtype)                 # (4, HWp)

    # --- images-per-step and a per-generation VMEM limit.
    in_item = jnp.dtype(x.dtype).itemsize
    out_item = out_dtype.itemsize
    cd_item = compute_dtype.itemsize
    im_item = im2col_dtype.itemsize
    per_img_blocks = 2 * C * HWp * (in_item + out_item)          # dbl-buffered io
    per_img_interm = HWp * (C * cd_item + Cmid * 4 +
                            20 * Cmid * im_item + 8 * C)         # rough upper bound
    fixed = 2 * (w1k.size * cd_item + w2k.size * im_item +
                 (b1k.size + b2k.size) * 4 + masks.size * im_item) + (2 << 20)
    vmem_cap = min(int(0.75 * vmem_phys), 96 << 20)              # ~48M v7x, 96M v5e/v6e
    budget = int(0.6 * vmem_cap)
    nb_vmem = max(1, (budget - fixed) // max(1, per_img_blocks + per_img_interm))
    nb_lane = max(1, 4096 // HWp)            # keep per-step lane extent moderate
    nb_cap = int(min(nb_vmem, nb_lane, 8, N))
    Nb = (images_per_step if images_per_step is not None
          else _largest_divisor_leq(N, max(1, nb_cap)))
    assert N % Nb == 0, "images_per_step must divide the batch"
    grid = (N // Nb,)

    est = fixed + Nb * (per_img_blocks + per_img_interm)
    vmem_limit = int(min(vmem_cap, max(32 << 20, 2 * est)))

    flops = N * HW * (2 * C * Cmid + 2 * C * 9 * Cmid)
    bytes_accessed = (N * C * HWp * (in_item + out_item)
                      + w1k.size * cd_item + w2k.size * im_item
                      + (b1k.size + b2k.size) * 4 + masks.size * im_item)

    kernel = functools.partial(shortcut_kernel, W=W,
                               compute_dtype=compute_dtype,
                               im2col_dtype=im2col_dtype)

    out = pl.pallas_call(
        kernel,
        out_shape=jax.ShapeDtypeStruct((N, C, HWp), out_dtype),
        grid=grid,
        in_specs=[
            pl.BlockSpec((Nb, C, HWp), lambda g: (g, 0, 0)),
            pl.BlockSpec((Cmid, C), lambda g: (0, 0)),
            pl.BlockSpec((Cmid, 1), lambda g: (0, 0)),
            pl.BlockSpec((C, 9 * Cmid), lambda g: (0, 0)),
            pl.BlockSpec((C, 1), lambda g: (0, 0)),
            pl.BlockSpec((4, HWp), lambda g: (0, 0)),
        ],
        out_specs=pl.BlockSpec((Nb, C, HWp), lambda g: (g, 0, 0)),
        compiler_params=pltpu.CompilerParams(
            dimension_semantics=("parallel",),
            vmem_limit_bytes=vmem_limit),
        cost_estimate=pl.CostEstimate(flops=int(flops), transcendentals=0,
                                      bytes_accessed=int(bytes_accessed)),
    )(x, w1k, b1k, w2k, b2k, masks)

    if HWp != HW:
        out = out[:, :, :HW]
    return out.reshape(N, C, H, W)


def make_params(key, channels):
    """Deterministic synthetic params: conv weights + BN folded to scale/bias."""
    C, Cmid, eps = channels, channels // 2, 1e-5
    ks = jax.random.split(key, 10)
    w1 = jax.random.normal(ks[0], (C, Cmid), jnp.float32) * 0.1          # 1x1 conv (Cin, Cout)
    w2 = jax.random.normal(ks[1], (3, 3, Cmid, C), jnp.float32) * 0.1    # HWIO
    g1 = 1.0 + 0.1 * jax.random.normal(ks[2], (Cmid,), jnp.float32)
    be1 = 0.1 * jax.random.normal(ks[3], (Cmid,), jnp.float32)
    m1 = 0.1 * jax.random.normal(ks[4], (Cmid,), jnp.float32)
    v1 = 1.0 + 0.1 * jax.random.uniform(ks[5], (Cmid,), jnp.float32)
    g2 = 1.0 + 0.1 * jax.random.normal(ks[6], (C,), jnp.float32)
    be2 = 0.1 * jax.random.normal(ks[7], (C,), jnp.float32)
    m2 = 0.1 * jax.random.normal(ks[8], (C,), jnp.float32)
    v2 = 1.0 + 0.1 * jax.random.uniform(ks[9], (C,), jnp.float32)
    s1 = g1 / jnp.sqrt(v1 + eps)
    b1 = be1 - m1 * s1
    s2 = g2 / jnp.sqrt(v2 + eps)
    b2 = be2 - m2 * s2
    return (w1, s1, b1, w2, s2, b2)


def reference_block(x_nchw, params):
    """Pure-JAX reference (NHWC convs) for correctness check."""
    w1, s1, b1, w2, s2, b2 = params
    x = jnp.transpose(x_nchw, (0, 2, 3, 1))
    dn = ('NHWC', 'HWIO', 'NHWC')
    y1 = lax.conv_general_dilated(x, w1.reshape(1, 1, *w1.shape), (1, 1),
                                  'SAME', dimension_numbers=dn)
    y1 = y1 * s1 + b1
    y1 = jnp.where(y1 > 0, y1, 0.1 * y1)
    y2 = lax.conv_general_dilated(y1, w2, (1, 1), 'SAME', dimension_numbers=dn)
    y2 = y2 * s2 + b2
    y2 = jnp.where(y2 > 0, y2, 0.1 * y2)
    return jnp.transpose(y2 + x, (0, 3, 1, 2))


if __name__ == "__main__":
    key = jax.random.PRNGKey(0)
    k_x, k_p = jax.random.split(key)

    N, C, H, W = 2, 8, 16, 16      # channels must be even (channels/2 in conv1)
    x = jax.random.normal(k_x, (N, C, H, W), jnp.float32)
    params = make_params(k_p, C)

    ref = jax.block_until_ready(reference_block(x, params))

    # Exact-math check: f32 everywhere, tight tolerance.
    out_f32 = jax.block_until_ready(
        shortcut_block(x, params, compute_dtype=jnp.float32))
    assert out_f32.shape == (N, C, H, W)
    assert jnp.allclose(out_f32, ref, rtol=1e-4, atol=1e-4), "f32 mismatch vs reference"

    # Performance mode: bf16 MXU/im2col, f32 residual & output.
    out_bf16 = jax.block_until_ready(
        shortcut_block(x, params, compute_dtype=jnp.bfloat16))
    assert out_bf16.shape == (N, C, H, W)
    assert jnp.allclose(out_bf16, ref, rtol=2e-2, atol=2e-2), "bf16 mismatch vs reference"

    # Low-HBM mode: bf16 output (residual add still f32, cast once on store).
    out_lo = jax.block_until_ready(
        shortcut_block(x, params, compute_dtype=jnp.bfloat16, out_dtype=jnp.bfloat16))
    assert out_lo.shape == (N, C, H, W)
    assert jnp.allclose(out_lo.astype(jnp.float32), ref, rtol=3e-2, atol=3e-2), \
        "bf16-output mismatch vs reference"

    print("KERNEL_OK")
</pallas_src>

<mosaic_0001>
module attributes {stable_mosaic.version = 11 : i64} {
  func.func @shortcut_kernel(%arg0: i32, %arg1: memref<2x8x256xf32, #tpu.memory_space<vmem>>, %arg2: memref<4x8xf32, #tpu.memory_space<vmem>>, %arg3: memref<4x1xf32, #tpu.memory_space<vmem>>, %arg4: memref<8x36xf32, #tpu.memory_space<vmem>>, %arg5: memref<8x1xf32, #tpu.memory_space<vmem>>, %arg6: memref<4x256xf32, #tpu.memory_space<vmem>>, %arg7: memref<2x8x256xf32, #tpu.memory_space<vmem>>) attributes {dimension_semantics = [#tpu.dimension_semantics<parallel>], iteration_bounds = array<i64: 1>, scalar_prefetch = 0 : i64, scratch_operands = 0 : i64, tpu.core_type = #tpu.core_type<tc>, window_params = [{transform_indices = @transform_0, window_bounds = array<i64: 2, 8, 256>}, {pipeline_mode = #tpu.pipeline_mode<synchronous>, transform_indices = @transform_1, window_bounds = array<i64: 4, 8>}, {pipeline_mode = #tpu.pipeline_mode<synchronous>, transform_indices = @transform_2, window_bounds = array<i64: 4, 1>}, {pipeline_mode = #tpu.pipeline_mode<synchronous>, transform_indices = @transform_3, window_bounds = array<i64: 8, 36>}, {pipeline_mode = #tpu.pipeline_mode<synchronous>, transform_indices = @transform_4, window_bounds = array<i64: 8, 1>}, {pipeline_mode = #tpu.pipeline_mode<synchronous>, transform_indices = @transform_5, window_bounds = array<i64: 4, 256>}, {transform_indices = @transform_6, window_bounds = array<i64: 2, 8, 256>}]} {
    %c0 = arith.constant 0 : index
    %c0_0 = arith.constant 0 : index
    %0 = vector.load %arg2[%c0, %c0_0] : memref<4x8xf32, #tpu.memory_space<vmem>>, vector<4x8xf32>
    %c0_1 = arith.constant 0 : index
    %c0_2 = arith.constant 0 : index
    %1 = vector.load %arg4[%c0_1, %c0_2] : memref<8x36xf32, #tpu.memory_space<vmem>>, vector<8x36xf32>
    %c0_3 = arith.constant 0 : index
    %c0_4 = arith.constant 0 : index
    %2 = vector.load %arg3[%c0_3, %c0_4] : memref<4x1xf32, #tpu.memory_space<vmem>>, vector<4x1xf32>
    %c0_5 = arith.constant 0 : index
    %c0_6 = arith.constant 0 : index
    %3 = vector.load %arg5[%c0_5, %c0_6] : memref<8x1xf32, #tpu.memory_space<vmem>>, vector<8x1xf32>
    %c0_7 = arith.constant 0 : index
    %c0_8 = arith.constant 0 : index
    %4 = vector.load %arg6[%c0_7, %c0_8] : memref<4x256xf32, #tpu.memory_space<vmem>>, vector<1x256xf32>
    %c1 = arith.constant 1 : index
    %c0_9 = arith.constant 0 : index
    %5 = vector.load %arg6[%c1, %c0_9] : memref<4x256xf32, #tpu.memory_space<vmem>>, vector<1x256xf32>
    %c2 = arith.constant 2 : index
    %c0_10 = arith.constant 0 : index
    %6 = vector.load %arg6[%c2, %c0_10] : memref<4x256xf32, #tpu.memory_space<vmem>>, vector<1x256xf32>
    %c3 = arith.constant 3 : index
    %c0_11 = arith.constant 0 : index
    %7 = vector.load %arg6[%c3, %c0_11] : memref<4x256xf32, #tpu.memory_space<vmem>>, vector<1x256xf32>
    %c0_12 = arith.constant 0 : index
    %c0_13 = arith.constant 0 : index
    %c0_14 = arith.constant 0 : index
    %8 = vector.load %arg1[%c0_12, %c0_13, %c0_14] : memref<2x8x256xf32, #tpu.memory_space<vmem>>, vector<1x8x256xf32>
    %9 = vector.shape_cast %8 : vector<1x8x256xf32> to vector<8x256xf32>
    %cst = arith.constant dense<0.000000e+00> : vector<4x256xf32>
    %10 = tpu.matmul %0, %9, %cst {dimension_numbers = #tpu.dot_dimension_numbers<[1], [0], [0], [1], [0, 0, 1, 1], [], []>} : vector<4x8xf32>, vector<8x256xf32>, vector<4x256xf32> -> vector<4x256xf32>
    %11 = vector.broadcast %2 : vector<4x1xf32> to vector<4x256xf32>
    %12 = arith.addf %10, %11 : vector<4x256xf32>
    %cst_15 = arith.constant 0.000000e+00 : f32
    %13 = vector.broadcast %cst_15 : f32 to vector<4x256xf32>
    %14 = arith.cmpf ogt, %12, %13 : vector<4x256xf32>
    %cst_16 = arith.constant 1.000000e-01 : f32
    %15 = vector.broadcast %cst_16 : f32 to vector<4x256xf32>
    %16 = arith.mulf %15, %12 : vector<4x256xf32>
    %17 = arith.select %14, %12, %16 : vector<4x256xi1>, vector<4x256xf32>
    %c1_i32 = arith.constant 1 : i32
    %18 = tpu.dynamic_rotate %17 by %c1_i32 dim 1 : vector<4x256xf32>, i32 -> vector<4x256xf32>
    %19 = vector.broadcast %4 : vector<1x256xf32> to vector<4x256xf32>
    %20 = arith.mulf %18, %19 : vector<4x256xf32>
    %c255_i32 = arith.constant 255 : i32
    %21 = tpu.dynamic_rotate %17 by %c255_i32 dim 1 : vector<4x256xf32>, i32 -> vector<4x256xf32>
    %22 = vector.broadcast %5 : vector<1x256xf32> to vector<4x256xf32>
    %23 = arith.mulf %21, %22 : vector<4x256xf32>
    %c16_i32 = arith.constant 16 : i32
    %24 = tpu.dynamic_rotate %20 by %c16_i32 dim 1 : vector<4x256xf32>, i32 -> vector<4x256xf32>
    %25 = vector.broadcast %6 : vector<1x256xf32> to vector<4x256xf32>
    %26 = arith.mulf %24, %25 : vector<4x256xf32>
    %c16_i32_17 = arith.constant 16 : i32
    %27 = tpu.dynamic_rotate %17 by %c16_i32_17 dim 1 : vector<4x256xf32>, i32 -> vector<4x256xf32>
    %28 = vector.broadcast %6 : vector<1x256xf32> to vector<4x256xf32>
    %29 = arith.mulf %27, %28 : vector<4x256xf32>
    %c16_i32_18 = arith.constant 16 : i32
    %30 = tpu.dynamic_rotate %23 by %c16_i32_18 dim 1 : vector<4x256xf32>, i32 -> vector<4x256xf32>
    %31 = vector.broadcast %6 : vector<1x256xf32> to vector<4x256xf32>
    %32 = arith.mulf %30, %31 : vector<4x256xf32>
    %c240_i32 = arith.constant 240 : i32
    %33 = tpu.dynamic_rotate %20 by %c240_i32 dim 1 : vector<4x256xf32>, i32 -> vector<4x256xf32>
    %34 = vector.broadcast %7 : vector<1x256xf32> to vector<4x256xf32>
    %35 = arith.mulf %33, %34 : vector<4x256xf32>
    %c240_i32_19 = arith.constant 240 : i32
    %36 = tpu.dynamic_rotate %17 by %c240_i32_19 dim 1 : vector<4x256xf32>, i32 -> vector<4x256xf32>
    %37 = vector.broadcast %7 : vector<1x256xf32> to vector<4x256xf32>
    %38 = arith.mulf %36, %37 : vector<4x256xf32>
    %c240_i32_20 = arith.constant 240 : i32
    %39 = tpu.dynamic_rotate %23 by %c240_i32_20 dim 1 : vector<4x256xf32>, i32 -> vector<4x256xf32>
    %40 = vector.broadcast %7 : vector<1x256xf32> to vector<4x256xf32>
    %41 = arith.mulf %39, %40 : vector<4x256xf32>
    %42 = tpu.concatenate %26, %29, %32, %20, %17, %23, %35, %38, %41 in 0 : vector<4x256xf32>, vector<4x256xf32>, vector<4x256xf32>, vector<4x256xf32>, vector<4x256xf32>, vector<4x256xf32>, vector<4x256xf32>, vector<4x256xf32>, vector<4x256xf32> -> vector<36x256xf32>
    %cst_21 = arith.constant dense<0.000000e+00> : vector<8x256xf32>
    %43 = tpu.matmul %1, %42, %cst_21 {dimension_numbers = #tpu.dot_dimension_numbers<[1], [0], [0], [1], [0, 0, 1, 1], [], []>} : vector<8x36xf32>, vector<36x256xf32>, vector<8x256xf32> -> vector<8x256xf32>
    %44 = vector.broadcast %3 : vector<8x1xf32> to vector<8x256xf32>
    %45 = arith.addf %43, %44 : vector<8x256xf32>
    %cst_22 = arith.constant 0.000000e+00 : f32
    %46 = vector.broadcast %cst_22 : f32 to vector<8x256xf32>
    %47 = arith.cmpf ogt, %45, %46 : vector<8x256xf32>
    %cst_23 = arith.constant 1.000000e-01 : f32
    %48 = vector.broadcast %cst_23 : f32 to vector<8x256xf32>
    %49 = arith.mulf %48, %45 : vector<8x256xf32>
    %50 = arith.select %47, %45, %49 : vector<8x256xi1>, vector<8x256xf32>
    %51 = arith.addf %50, %9 : vector<8x256xf32>
    %c0_24 = arith.constant 0 : index
    %c0_25 = arith.constant 0 : index
    %c0_26 = arith.constant 0 : index
    %52 = vector.load %arg7[%c0_24, %c0_25, %c0_26] : memref<2x8x256xf32, #tpu.memory_space<vmem>>, vector<1x8x256xf32>
    %53 = vector.shape_cast %52 : vector<1x8x256xf32> to vector<8x256xf32>
    %54 = vector.shape_cast %51 : vector<8x256xf32> to vector<1x8x256xf32>
    tpu.vector_store %arg7[%c0_24, %c0_25, %c0_26], %54 {strides = array<i32>} : memref<2x8x256xf32, #tpu.memory_space<vmem>>, vector<1x8x256xf32>,
    %c1_27 = arith.constant 1 : index
    %c0_28 = arith.constant 0 : index
    %c0_29 = arith.constant 0 : index
    %55 = vector.load %arg1[%c1_27, %c0_28, %c0_29] : memref<2x8x256xf32, #tpu.memory_space<vmem>>, vector<1x8x256xf32>
    %56 = vector.shape_cast %55 : vector<1x8x256xf32> to vector<8x256xf32>
    %cst_30 = arith.constant dense<0.000000e+00> : vector<4x256xf32>
    %57 = tpu.matmul %0, %56, %cst_30 {dimension_numbers = #tpu.dot_dimension_numbers<[1], [0], [0], [1], [0, 0, 1, 1], [], []>} : vector<4x8xf32>, vector<8x256xf32>, vector<4x256xf32> -> vector<4x256xf32>
    %58 = vector.broadcast %2 : vector<4x1xf32> to vector<4x256xf32>
    %59 = arith.addf %57, %58 : vector<4x256xf32>
    %cst_31 = arith.constant 0.000000e+00 : f32
    %60 = vector.broadcast %cst_31 : f32 to vector<4x256xf32>
    %61 = arith.cmpf ogt, %59, %60 : vector<4x256xf32>
    %cst_32 = arith.constant 1.000000e-01 : f32
    %62 = vector.broadcast %cst_32 : f32 to vector<4x256xf32>
    %63 = arith.mulf %62, %59 : vector<4x256xf32>
    %64 = arith.select %61, %59, %63 : vector<4x256xi1>, vector<4x256xf32>
    %c1_i32_33 = arith.constant 1 : i32
    %65 = tpu.dynamic_rotate %64 by %c1_i32_33 dim 1 : vector<4x256xf32>, i32 -> vector<4x256xf32>
    %66 = vector.broadcast %4 : vector<1x256xf32> to vector<4x256xf32>
    %67 = arith.mulf %65, %66 : vector<4x256xf32>
    %c255_i32_34 = arith.constant 255 : i32
    %68 = tpu.dynamic_rotate %64 by %c255_i32_34 dim 1 : vector<4x256xf32>, i32 -> vector<4x256xf32>
    %69 = vector.broadcast %5 : vector<1x256xf32> to vector<4x256xf32>
    %70 = arith.mulf %68, %69 : vector<4x256xf32>
    %c16_i32_35 = arith.constant 16 : i32
    %71 = tpu.dynamic_rotate %67 by %c16_i32_35 dim 1 : vector<4x256xf32>, i32 -> vector<4x256xf32>
    %72 = vector.broadcast %6 : vector<1x256xf32> to vector<4x256xf32>
    %73 = arith.mulf %71, %72 : vector<4x256xf32>
    %c16_i32_36 = arith.constant 16 : i32
    %74 = tpu.dynamic_rotate %64 by %c16_i32_36 dim 1 : vector<4x256xf32>, i32 -> vector<4x256xf32>
    %75 = vector.broadcast %6 : vector<1x256xf32> to vector<4x256xf32>
    %76 = arith.mulf %74, %75 : vector<4x256xf32>
    %c16_i32_37 = arith.constant 16 : i32
    %77 = tpu.dynamic_rotate %70 by %c16_i32_37 dim 1 : vector<4x256xf32>, i32 -> vector<4x256xf32>
    %78 = vector.broadcast %6 : vector<1x256xf32> to vector<4x256xf32>
    %79 = arith.mulf %77, %78 : vector<4x256xf32>
    %c240_i32_38 = arith.constant 240 : i32
    %80 = tpu.dynamic_rotate %67 by %c240_i32_38 dim 1 : vector<4x256xf32>, i32 -> vector<4x256xf32>
    %81 = vector.broadcast %7 : vector<1x256xf32> to vector<4x256xf32>
    %82 = arith.mulf %80, %81 : vector<4x256xf32>
    %c240_i32_39 = arith.constant 240 : i32
    %83 = tpu.dynamic_rotate %64 by %c240_i32_39 dim 1 : vector<4x256xf32>, i32 -> vector<4x256xf32>
    %84 = vector.broadcast %7 : vector<1x256xf32> to vector<4x256xf32>
    %85 = arith.mulf %83, %84 : vector<4x256xf32>
    %c240_i32_40 = arith.constant 240 : i32
    %86 = tpu.dynamic_rotate %70 by %c240_i32_40 dim 1 : vector<4x256xf32>, i32 -> vector<4x256xf32>
    %87 = vector.broadcast %7 : vector<1x256xf32> to vector<4x256xf32>
    %88 = arith.mulf %86, %87 : vector<4x256xf32>
    %89 = tpu.concatenate %73, %76, %79, %67, %64, %70, %82, %85, %88 in 0 : vector<4x256xf32>, vector<4x256xf32>, vector<4x256xf32>, vector<4x256xf32>, vector<4x256xf32>, vector<4x256xf32>, vector<4x256xf32>, vector<4x256xf32>, vector<4x256xf32> -> vector<36x256xf32>
    %cst_41 = arith.constant dense<0.000000e+00> : vector<8x256xf32>
    %90 = tpu.matmul %1, %89, %cst_41 {dimension_numbers = #tpu.dot_dimension_numbers<[1], [0], [0], [1], [0, 0, 1, 1], [], []>} : vector<8x36xf32>, vector<36x256xf32>, vector<8x256xf32> -> vector<8x256xf32>
    %91 = vector.broadcast %3 : vector<8x1xf32> to vector<8x256xf32>
    %92 = arith.addf %90, %91 : vector<8x256xf32>
    %cst_42 = arith.constant 0.000000e+00 : f32
    %93 = vector.broadcast %cst_42 : f32 to vector<8x256xf32>
    %94 = arith.cmpf ogt, %92, %93 : vector<8x256xf32>
    %cst_43 = arith.constant 1.000000e-01 : f32
    %95 = vector.broadcast %cst_43 : f32 to vector<8x256xf32>
    %96 = arith.mulf %95, %92 : vector<8x256xf32>
    %97 = arith.select %94, %92, %96 : vector<8x256xi1>, vector<8x256xf32>
    %98 = arith.addf %97, %56 : vector<8x256xf32>
    %c1_44 = arith.constant 1 : index
    %c0_45 = arith.constant 0 : index
    %c0_46 = arith.constant 0 : index
    %99 = vector.load %arg7[%c1_44, %c0_45, %c0_46] : memref<2x8x256xf32, #tpu.memory_space<vmem>>, vector<1x8x256xf32>
    %100 = vector.shape_cast %99 : vector<1x8x256xf32> to vector<8x256xf32>
    %101 = vector.shape_cast %98 : vector<8x256xf32> to vector<1x8x256xf32>
    tpu.vector_store %arg7[%c1_44, %c0_45, %c0_46], %101 {strides = array<i32>} : memref<2x8x256xf32, #tpu.memory_space<vmem>>, vector<1x8x256xf32>,
    return
  }
  func.func @transform_0(%arg0: i32) -> (i32, i32, i32) {
    %c0_i32 = arith.constant 0 : i32
    %c0_i32_0 = arith.constant 0 : i32
    %c0_i32_1 = arith.constant 0 : i32
    return %arg0, %c0_i32, %c0_i32_0 : i32, i32, i32
  }
  func.func @transform_1(%arg0: i32) -> (i32, i32) {
    %c0_i32 = arith.constant 0 : i32
    %c0_i32_0 = arith.constant 0 : i32
    %c0_i32_1 = arith.constant 0 : i32
    return %c0_i32, %c0_i32_0 : i32, i32
  }
  func.func @transform_2(%arg0: i32) -> (i32, i32) {
    %c0_i32 = arith.constant 0 : i32
    %c0_i32_0 = arith.constant 0 : i32
    %c0_i32_1 = arith.constant 0 : i32
    return %c0_i32, %c0_i32_0 : i32, i32
  }
  func.func @transform_3(%arg0: i32) -> (i32, i32) {
    %c0_i32 = arith.constant 0 : i32
    %c0_i32_0 = arith.constant 0 : i32
    %c0_i32_1 = arith.constant 0 : i32
    return %c0_i32, %c0_i32_0 : i32, i32
  }
  func.func @transform_4(%arg0: i32) -> (i32, i32) {
    %c0_i32 = arith.constant 0 : i32
    %c0_i32_0 = arith.constant 0 : i32
    %c0_i32_1 = arith.constant 0 : i32
    return %c0_i32, %c0_i32_0 : i32, i32
  }
  func.func @transform_5(%arg0: i32) -> (i32, i32) {
    %c0_i32 = arith.constant 0 : i32
    %c0_i32_0 = arith.constant 0 : i32
    %c0_i32_1 = arith.constant 0 : i32
    return %c0_i32, %c0_i32_0 : i32, i32
  }
  func.func @transform_6(%arg0: i32) -> (i32, i32, i32) {
    %c0_i32 = arith.constant 0 : i32
    %c0_i32_0 = arith.constant 0 : i32
    %c0_i32_1 = arith.constant 0 : i32
    return %arg0, %c0_i32, %c0_i32_0 : i32, i32, i32
  }
}

</mosaic_0001>

<llo_original>
// kernel: tpu_custom_call.1
$region0: #{tpu_custom_call.1}
  #allocation0 [shape = 'u32[]', space=smem, size = 0x4, offset = 0x4, fixed_abs, tag = 'smem constant byte address 0x4 - core index']
  #allocation1 [shape = 'u32[144,128]{1,0:T(1,128)}', space=vmem, size = 0x12000, scoped, tag = 'internal scratch']
  %s0 = inlined_call_operand.hbm [shape: f32[2,8,256], index: 0, kind: input, shape index: {}]
  %s1 = inlined_call_operand.hbm [shape: f32[4,8], index: 1, kind: input, shape index: {}]
  %s2 = inlined_call_operand.vmem [shape: f32[4,1], index: 2, kind: input, shape index: {}]
  %s3 = inlined_call_operand.vmem [shape: f32[8,36], index: 3, kind: input, shape index: {}]
  %s4 = inlined_call_operand.vmem [shape: f32[8,1], index: 4, kind: input, shape index: {}]
  %s5 = inlined_call_operand.vmem [shape: f32[4,256], index: 5, kind: input, shape index: {}]
  %s6 = inlined_call_operand.hbm [shape: f32[2,8,256], index: 6, kind: output, shape index: {}]
  %s7 = sld [smem:[#allocation0]]
  $region42: #{tpu_custom_call.1} parent=0
    _
  %s9 = ssub.s32 1, %s7
  %s10 = scalar_select 0, %s9, %s7
  $region1: #{tpu_custom_call.1} parent=0
    #allocation2 [shape = 'u8[16384]{0}', space=vmem, size = 0x4000, scoped, tag = 'input window, operand 0, single buffered']
    #allocation3 [shape = 's32[1]{0}', space=sflag, size = 0x4, scoped, tag = 'scoped memory for tpu_custom_call.1']
    #allocation4 [shape = 's32[1]{0}', space=sflag, size = 0x4, scoped, tag = 'scoped memory for tpu_custom_call.1']
    #allocation5 [shape = 'u8[2048]{0}', space=vmem, size = 0x800, scoped, tag = 'input window, operand 1, single buffered']
    #allocation6 [shape = 's32[1]{0}', space=sflag, size = 0x4, scoped, tag = 'scoped memory for tpu_custom_call.1']
    #allocation7 [shape = 'u8[16384]{0}', space=vmem, size = 0x4000, scoped, tag = 'output window, operand 0, single buffered']
    %11 = vsyncpa [#allocation3], 0
    %12 = vsyncpa [#allocation6], 0
    %13 = vsyncpa [#allocation4], 0
    // Predicated region
    $region2: #{tpu_custom_call.1} parent=1 // pred_check
      _
    $region3: #{tpu_custom_call.1} parent=1 // pred_check_branch
      %15 = sbr.rel (0) target = $region5
    $region4: #{tpu_custom_call.1} parent=1 // pred_region
      %s17 = ssub.s32 512, 512
      %18 = vsyncadd [#allocation3], %s17
      %s19 = sshll.u32 [#allocation2], 4
      %s20 = int_to_ptr.vmem [resolvable:$true] %s19
      %25 = dma.hbm_to_vmem [thread:$0]  %s0, 512, %s20, [#allocation3], 256, 256, 16
    $region5: #{tpu_custom_call.1} parent=1 // pred_fallthru
      _
    // Predicated region
    $region6: #{tpu_custom_call.1} parent=1 // pred_check
      _
    $region7: #{tpu_custom_call.1} parent=1 // pred_check_branch
      %27 = sbr.rel (0) target = $region9
    $region8: #{tpu_custom_call.1} parent=1 // pred_region
      %s29 = ssub.s32 64, 64
      %30 = vsyncadd [#allocation6], %s29
      %s32 = sshll.u32 [#allocation5], 4
      %s33 = int_to_ptr.vmem [resolvable:$true] %s32
      %35 = dma.hbm_to_vmem [thread:$0]  %s1, 64, %s33, [#allocation6]
    $region9: #{tpu_custom_call.1} parent=1 // pred_fallthru
      _
    // Predicated region
    $region10: #{tpu_custom_call.1} parent=1 // pred_check
      _
    $region11: #{tpu_custom_call.1} parent=1 // pred_check_branch
      %37 = sbr.rel (0) target = $region13
    $region12: #{tpu_custom_call.1} parent=1 // pred_region
      _
    $region13: #{tpu_custom_call.1} parent=1 // pred_fallthru
      _
    // Predicated region
    $region14: #{tpu_custom_call.1} parent=1 // pred_check
      _
    $region15: #{tpu_custom_call.1} parent=1 // pred_check_branch
      %39 = sbr.rel (0) target = $region17
    $region16: #{tpu_custom_call.1} parent=1 // pred_region
      _
    $region17: #{tpu_custom_call.1} parent=1 // pred_fallthru
      _
    // Predicated region
    $region18: #{tpu_custom_call.1} parent=1 // pred_check
      _
    $region19: #{tpu_custom_call.1} parent=1 // pred_check_branch
      %41 = sbr.rel (0) target = $region21
    $region20: #{tpu_custom_call.1} parent=1 // pred_region
      _
    $region21: #{tpu_custom_call.1} parent=1 // pred_fallthru
      _
    // Predicated region
    $region22: #{tpu_custom_call.1} parent=1 // pred_check
      _
    $region23: #{tpu_custom_call.1} parent=1 // pred_check_branch
      %43 = sbr.rel (0) target = $region25
    $region24: #{tpu_custom_call.1} parent=1 // pred_region
      _
    $region25: #{tpu_custom_call.1} parent=1 // pred_fallthru
      _
    // Predicated region
    $region26: #{tpu_custom_call.1} parent=1 // pred_check
      _
    $region27: #{tpu_custom_call.1} parent=1 // pred_check_branch
      %45 = sbr.rel (0) target = $region29
    $region28: #{tpu_custom_call.1} parent=1 // pred_region
      %46 = dma.done [#allocation3], 512
    $region29: #{tpu_custom_call.1} parent=1 // pred_fallthru
      _
    // Predicated region
    $region30: #{tpu_custom_call.1} parent=1 // pred_check
      _
    $region31: #{tpu_custom_call.1} parent=1 // pred_check_branch
      %48 = sbr.rel (0) target = $region33
    $region32: #{tpu_custom_call.1} parent=1 // pred_region
      %49 = dma.done [#allocation6], 64
    $region33: #{tpu_custom_call.1} parent=1 // pred_fallthru
      _
    %v50 = vld [vmem:[#allocation5] sm:$0xf]
    %v51 = vld [vmem:[%s3] sm:$0xff]
    %v52 = vld [vmem:[%s2] sm:$0xf]
    %v53 = vld [vmem:[%s4] sm:$0xff]
    %v54 = vld [vmem:[%s5] ss:$4 sm:$0x3]
    %s55 = scalar_lea.vmem %s5, 1
    %v56 = vld [vmem:[%s55] ss:$4 sm:$0x3]
    %s57 = scalar_lea.vmem %s5, 2
    %v58 = vld [vmem:[%s57] ss:$4 sm:$0x3]
    %s59 = scalar_lea.vmem %s5, 3
    %v60 = vld [vmem:[%s59] ss:$4 sm:$0x3]
    %v61 = vld [vmem:[#allocation2] sm:$0xff]
    %v62 = vld [vmem:[#allocation2 + $0x8] sm:$0xff]
    %64 = vset.pattern.permute.xlu0 0
    %65 = vperm.xlu0 %64, %v52
    %v66 = vpop.permute.xlu0 %65
    %vm68 = vcmask 64512
    %v70 = vsel %vm68, %v50, 0
    %72 = vmatprep.subr.mxu0 %v62
    %73 = vmatpush1.msra.mxu0 %v61
    %74 = vmatprep.subr.mxu0 0.0
    %75 = vmatpush1.msra.mxu0 0.0
    %76 = vmatprep.subr.mxu0 0.0
    %77 = vmatpush1.msra.mxu0 0.0
    %78 = vmatprep.subr.mxu0 0.0
    %79 = vmatpush1.msra.mxu0 0.0
    %80 = vmatprep.subr.mxu0 0.0
    %81 = vmatpush1.msra.mxu0 0.0
    %82 = vmatprep.subr.mxu0 0.0
    %83 = vmatpush1.msra.mxu0 0.0
    %84 = vmatprep.subr.mxu0 0.0
    %85 = vmatpush1.msra.mxu0 0.0
    %86 = vmatprep.subr.mxu0 0.0
    %87 = vmatpush1.msra.mxu0 0.0
    %88 = vmatprep.subr.mxu0 0.0
    %89 = vmatpush1.msra.mxu0 0.0
    %90 = vmatprep.subr.mxu0 0.0
    %91 = vmatpush1.msra.mxu0 0.0
    %92 = vmatprep.subr.mxu0 0.0
    %93 = vmatpush1.msra.mxu0 0.0
    %94 = vmatprep.subr.mxu0 0.0
    %95 = vmatpush1.msra.mxu0 0.0
    %96 = vmatprep.subr.mxu0 0.0
    %97 = vmatpush1.msra.mxu0 0.0
    %98 = vmatprep.subr.mxu0 0.0
    %99 = vmatpush1.msra.mxu0 0.0
    %100 = vmatprep.subr.mxu0 0.0
    %101 = vmatpush1.msra.mxu0 0.0
    %102 = vmatprep.subr.mxu0 0.0
    %103 = vmatpush1.msra.mxu0 0.0
    %104 = vmatprep.subr.mxu0 0.0
    %105 = vmatpush1.msra.mxu0 0.0
    %106 = vmatprep.subr.mxu0 0.0
    %107 = vmatpush1.msra.mxu0 0.0
    %108 = vmatprep.subr.mxu0 0.0
    %109 = vmatpush1.msra.mxu0 0.0
    %110 = vmatprep.subr.mxu0 0.0
    %111 = vmatpush1.msra.mxu0 0.0
    %112 = vmatprep.subr.mxu0 0.0
    %113 = vmatpush1.msra.mxu0 0.0
    %114 = vmatprep.subr.mxu0 0.0
    %115 = vmatpush1.msra.mxu0 0.0
    %116 = vmatprep.subr.mxu0 0.0
    %117 = vmatpush1.msra.mxu0 0.0
    %118 = vmatprep.subr.mxu0 0.0
    %119 = vmatpush1.msra.mxu0 0.0
    %120 = vmatprep.subr.mxu0 0.0
    %121 = vmatpush1.msra.mxu0 0.0
    %122 = vmatprep.subr.mxu0 0.0
    %123 = vmatpush1.msra.mxu0 0.0
    %124 = vmatprep.subr.mxu0 0.0
    %125 = vmatpush1.msra.mxu0 0.0
    %126 = vmatprep.subr.mxu0 0.0
    %127 = vmatpush1.msra.mxu0 0.0
    %128 = vmatprep.subr.mxu0 0.0
    %129 = vmatpush1.msra.mxu0 0.0
    %130 = vmatprep.subr.mxu0 0.0
    %131 = vmatpush1.msra.mxu0 0.0
    %132 = vmatprep.subr.mxu0 0.0
    %133 = vmatpush1.msra.mxu0 0.0
    %134 = vmatprep.subr.mxu0 0.0
    %135 = vmatpush1.msra.mxu0 0.0
    %136 = vmatprep.mubr.f32.mxu0 0.0
    %137 = vmatmul.mubr.f32.gmra.mrb[0].mxu0 %v70
    %v138 = vpop.f32.mrb[0].mxu0
    %v139 = vadd.f32 %v66, %v138
    %v140 = vpop.f32.mrb[0].mxu0
    %v141 = vadd.f32 %v66, %v140
    %142 = vdwg.mxu0
    %vm143 = vcmp.gt.f32.partialorder %v139, 0.0
    %vm144 = vcmp.gt.f32.partialorder %v141, 0.0
    %v145 = vmul.f32 %v139, 0.1
    %v146 = vmul.f32 %v141, 0.1
    %v147 = vsel %vm143, %v139, %v145
    %v148 = vsel %vm144, %v141, %v146
    %149 = vrot.lane.b32.xlu0 %v147, 1
    %v150 = vpop.permute.xlu0 %149
    %151 = vrot.lane.b32.xlu0 %v148, 1
    %v152 = vpop.permute.xlu0 %151
    %v153 = vlaneseq
    %v154 = vand.u32 %v153, 127
    %vm155 = vcmp.lt.s32.totalorder %v154, 1
    %v156 = vsel %vm155, %v150, %v152
    %v157 = vsel %vm155, %v152, %v150
    %v159 = vlaneseq
    %v160 = vshrl.u32 %v159, 7
    %v161 = vsub.s32 0, %v160
    %v162 = vrot.slane %v54, %v161
    %v163 = vlaneseq
    %v164 = vshrl.u32 %v163, 7
    %v165 = vsub.s32 1, %v164
    %v166 = vrot.slane %v54, %v165
    %v169 = vmul.f32 %v157, %v162
    %v170 = vmul.f32 %v156, %v166
    %171 = vrot.lane.b32.xlu0 %v147, 127
    %v172 = vpop.permute.xlu0 %171
    %173 = vrot.lane.b32.xlu0 %v148, 127
    %v174 = vpop.permute.xlu0 %173
    %vm175 = vcmp.lt.s32.totalorder %v154, 127
    %v176 = vsel %vm175, %v172, %v174
    %v177 = vsel %vm175, %v174, %v172
    %v179 = vlaneseq
    %v180 = vshrl.u32 %v179, 7
    %v181 = vsub.s32 0, %v180
    %v182 = vrot.slane %v56, %v181
    %v183 = vlaneseq
    %v184 = vshrl.u32 %v183, 7
    %v185 = vsub.s32 1, %v184
    %v186 = vrot.slane %v56, %v185
    %v189 = vmul.f32 %v176, %v182
    %v190 = vmul.f32 %v177, %v186
    %191 = vrot.lane.b32.xlu0 %v169, 16
    %v192 = vpop.permute.xlu0 %191
    %193 = vrot.lane.b32.xlu0 %v170, 16
    %v194 = vpop.permute.xlu0 %193
    %vm195 = vcmp.lt.s32.totalorder %v154, 16
    %v196 = vsel %vm195, %v192, %v194
    %v197 = vsel %vm195, %v194, %v192
    %v199 = vlaneseq
    %v200 = vshrl.u32 %v199, 7
    %v201 = vsub.s32 0, %v200
    %v202 = vrot.slane %v58, %v201
    %v203 = vlaneseq
    %v204 = vshrl.u32 %v203, 7
    %v205 = vsub.s32 1, %v204
    %v206 = vrot.slane %v58, %v205
    %v209 = vmul.f32 %v197, %v202
    %v210 = vmul.f32 %v196, %v206
    %211 = vrot.lane.b32.xlu0 %v147, 16
    %v212 = vpop.permute.xlu0 %211
    %213 = vrot.lane.b32.xlu0 %v148, 16
    %v214 = vpop.permute.xlu0 %213
    %v215 = vsel %vm195, %v212, %v214
    %v216 = vsel %vm195, %v214, %v212
    %v217 = vmul.f32 %v216, %v202
    %v218 = vmul.f32 %v215, %v206
    %219 = vrot.lane.b32.xlu0 %v189, 16
    %v220 = vpop.permute.xlu0 %219
    %221 = vrot.lane.b32.xlu0 %v190, 16
    %v222 = vpop.permute.xlu0 %221
    %v223 = vsel %vm195, %v220, %v222
    %v224 = vsel %vm195, %v222, %v220
    %v225 = vmul.f32 %v224, %v202
    %v226 = vmul.f32 %v223, %v206
    %227 = vrot.lane.b32.xlu0 %v169, 112
    %v228 = vpop.permute.xlu0 %227
    %229 = vrot.lane.b32.xlu0 %v170, 112
    %v230 = vpop.permute.xlu0 %229
    %vm231 = vcmp.lt.s32.totalorder %v154, 112
    %v232 = vsel %vm231, %v228, %v230
    %v233 = vsel %vm231, %v230, %v228
    %v235 = vlaneseq
    %v236 = vshrl.u32 %v235, 7
    %v237 = vsub.s32 0, %v236
    %v238 = vrot.slane %v60, %v237
    %v239 = vlaneseq
    %v240 = vshrl.u32 %v239, 7
    %v241 = vsub.s32 1, %v240
    %v242 = vrot.slane %v60, %v241
    %v245 = vmul.f32 %v232, %v238
    %v246 = vmul.f32 %v233, %v242
    %247 = vrot.lane.b32.xlu0 %v147, 112
    %v248 = vpop.permute.xlu0 %247
    %249 = vrot.lane.b32.xlu0 %v148, 112
    %v250 = vpop.permute.xlu0 %249
    %v251 = vsel %vm231, %v248, %v250
    %v252 = vsel %vm231, %v250, %v248
    %v253 = vmul.f32 %v251, %v238
    %v254 = vmul.f32 %v252, %v242
    %255 = vrot.lane.b32.xlu0 %v189, 112
    %v256 = vpop.permute.xlu0 %255
    %257 = vrot.lane.b32.xlu0 %v190, 112
    %v258 = vpop.permute.xlu0 %257
    %v259 = vsel %vm231, %v256, %v258
    %v260 = vsel %vm231, %v258, %v256
    %v261 = vmul.f32 %v259, %v238
    %v262 = vmul.f32 %v260, %v242
    %v265 = vrot.slane %v217, 4
    %v266 = vrot.slane %v218, 4
    %v271 = vrot.slane %v169, 4
    %v272 = vrot.slane %v170, 4
    %v277 = vrot.slane %v189, 4
    %v278 = vrot.slane %v190, 4
    %v283 = vrot.slane %v253, 4
    %v284 = vrot.slane %v254, 4
    %vm287 = vcmask 1043456
    %v288 = vsel %vm287, %v209, %v265
    %v289 = vsel %vm287, %v210, %v266
    %v290 = vsel %vm287, %v225, %v271
    %v291 = vsel %vm287, %v226, %v272
    %v292 = vsel %vm287, %v147, %v277
    %v293 = vsel %vm287, %v148, %v278
    %v294 = vsel %vm287, %v245, %v283
    %v295 = vsel %vm287, %v246, %v284
    %297 = vset.pattern.permute.xlu0 0
    %298 = vperm.xlu0 %297, %v53
    %v299 = vpop.permute.xlu0 %298
    %vm301 = vcmask 293888
    %v303 = vsel %vm301, %v51, 0
    %v306 = vsel %vm287, %v261, 0
    %v309 = vsel %vm287, %v262, 0
    %311 = vmatprep.subr.mxu0 %v289
    %312 = vmatpush1.msra.mxu0 %v288
    %313 = vmatprep.subr.mxu0 %v291
    %314 = vmatpush1.msra.mxu0 %v290
    %315 = vmatprep.subr.mxu0 %v293
    %316 = vmatpush1.msra.mxu0 %v292
    %317 = vmatprep.subr.mxu0 %v295
    %318 = vmatpush1.msra.mxu0 %v294
    %319 = vmatprep.subr.mxu0 %v309
    %320 = vmatpush1.msra.mxu0 %v306
    %321 = vmatprep.subr.mxu0 0.0
    %322 = vmatpush1.msra.mxu0 0.0
    %323 = vmatprep.subr.mxu0 0.0
    %324 = vmatpush1.msra.mxu0 0.0
    %325 = vmatprep.subr.mxu0 0.0
    %326 = vmatpush1.msra.mxu0 0.0
    %327 = vmatprep.subr.mxu0 0.0
    %328 = vmatpush1.msra.mxu0 0.0
    %329 = vmatprep.subr.mxu0 0.0
    %330 = vmatpush1.msra.mxu0 0.0
    %331 = vmatprep.subr.mxu0 0.0
    %332 = vmatpush1.msra.mxu0 0.0
    %333 = vmatprep.subr.mxu0 0.0
    %334 = vmatpush1.msra.mxu0 0.0
    %335 = vmatprep.subr.mxu0 0.0
    %336 = vmatpush1.msra.mxu0 0.0
    %337 = vmatprep.subr.mxu0 0.0
    %338 = vmatpush1.msra.mxu0 0.0
    %339 = vmatprep.subr.mxu0 0.0
    %340 = vmatpush1.msra.mxu0 0.0
    %341 = vmatprep.subr.mxu0 0.0
    %342 = vmatpush1.msra.mxu0 0.0
    %343 = vmatprep.subr.mxu0 0.0
    %344 = vmatpush1.msra.mxu0 0.0
    %345 = vmatprep.subr.mxu0 0.0
    %346 = vmatpush1.msra.mxu0 0.0
    %347 = vmatprep.subr.mxu0 0.0
    %348 = vmatpush1.msra.mxu0 0.0
    %349 = vmatprep.subr.mxu0 0.0
    %350 = vmatpush1.msra.mxu0 0.0
    %351 = vmatprep.subr.mxu0 0.0
    %352 = vmatpush1.msra.mxu0 0.0
    %353 = vmatprep.subr.mxu0 0.0
    %354 = vmatpush1.msra.mxu0 0.0
    %355 = vmatprep.subr.mxu0 0.0
    %356 = vmatpush1.msra.mxu0 0.0
    %357 = vmatprep.subr.mxu0 0.0
    %358 = vmatpush1.msra.mxu0 0.0
    %359 = vmatprep.subr.mxu0 0.0
    %360 = vmatpush1.msra.mxu0 0.0
    %361 = vmatprep.subr.mxu0 0.0
    %362 = vmatpush1.msra.mxu0 0.0
    %363 = vmatprep.subr.mxu0 0.0
    %364 = vmatpush1.msra.mxu0 0.0
    %365 = vmatprep.subr.mxu0 0.0
    %366 = vmatpush1.msra.mxu0 0.0
    %367 = vmatprep.subr.mxu0 0.0
    %368 = vmatpush1.msra.mxu0 0.0
    %369 = vmatprep.subr.mxu0 0.0
    %370 = vmatpush1.msra.mxu0 0.0
    %371 = vmatprep.subr.mxu0 0.0
    %372 = vmatpush1.msra.mxu0 0.0
    %373 = vmatprep.subr.mxu0 0.0
    %374 = vmatpush1.msra.mxu0 0.0
    %375 = vmatprep.mubr.f32.mxu0 0.0
    %376 = vmatmul.mubr.f32.gmra.mrb[0].mxu0 %v303
    %v377 = vpop.f32.mrb[0].mxu0
    %v378 = vadd.f32 %v299, %v377
    %v379 = vpop.f32.mrb[0].mxu0
    %v380 = vadd.f32 %v299, %v379
    %381 = vdwg.mxu0
    %vm382 = vcmp.gt.f32.partialorder %v378, 0.0
    %vm383 = vcmp.gt.f32.partialorder %v380, 0.0
    %v384 = vmul.f32 %v378, 0.1
    %v385 = vmul.f32 %v380, 0.1
    %v386 = vsel %vm382, %v378, %v384
    %v387 = vsel %vm383, %v380, %v385
    %v388 = vadd.f32 %v386, %v61
    %v389 = vadd.f32 %v387, %v62
    %390 = vst [vmem:[#allocation7] sm:$0xff] %v388
    %391 = vst [vmem:[#allocation7 + $0x8] sm:$0xff] %v389
    %s392 = scalar_lea.vmem [#allocation2], 16
    %v393 = vld [vmem:[%s392] sm:$0xff]
    %v394 = vld [vmem:[%s392 + $0x8] sm:$0xff]
    %395 = vmatprep.subr.mxu0 %v394
    %396 = vmatpush1.msra.mxu0 %v393
    %397 = vmatprep.subr.mxu0 0.0
    %398 = vmatpush1.msra.mxu0 0.0
    %399 = vmatprep.subr.mxu0 0.0
    %400 = vmatpush1.msra.mxu0 0.0
    %401 = vmatprep.subr.mxu0 0.0
    %402 = vmatpush1.msra.mxu0 0.0
    %403 = vmatprep.subr.mxu0 0.0
    %404 = vmatpush1.msra.mxu0 0.0
    %405 = vmatprep.subr.mxu0 0.0
    %406 = vmatpush1.msra.mxu0 0.0
    %407 = vmatprep.subr.mxu0 0.0
    %408 = vmatpush1.msra.mxu0 0.0
    %409 = vmatprep.subr.mxu0 0.0
    %410 = vmatpush1.msra.mxu0 0.0
    %411 = vmatprep.subr.mxu0 0.0
    %412 = vmatpush1.msra.mxu0 0.0
    %413 = vmatprep.subr.mxu0 0.0
    %414 = vmatpush1.msra.mxu0 0.0
    %415 = vmatprep.subr.mxu0 0.0
    %416 = vmatpush1.msra.mxu0 0.0
    %417 = vmatprep.subr.mxu0 0.0
    %418 = vmatpush1.msra.mxu0 0.0
    %419 = vmatprep.subr.mxu0 0.0
    %420 = vmatpush1.msra.mxu0 0.0
    %421 = vmatprep.subr.mxu0 0.0
    %422 = vmatpush1.msra.mxu0 0.0
    %423 = vmatprep.subr.mxu0 0.0
    %424 = vmatpush1.msra.mxu0 0.0
    %425 = vmatprep.subr.mxu0 0.0
    %426 = vmatpush1.msra.mxu0 0.0
    %427 = vmatprep.subr.mxu0 0.0
    %428 = vmatpush1.msra.mxu0 0.0
    %429 = vmatprep.subr.mxu0 0.0
    %430 = vmatpush1.msra.mxu0 0.0
    %431 = vmatprep.subr.mxu0 0.0
    %432 = vmatpush1.msra.mxu0 0.0
    %433 = vmatprep.subr.mxu0 0.0
    %434 = vmatpush1.msra.mxu0 0.0
    %435 = vmatprep.subr.mxu0 0.0
    %436 = vmatpush1.msra.mxu0 0.0
    %437 = vmatprep.subr.mxu0 0.0
    %438 = vmatpush1.msra.mxu0 0.0
    %439 = vmatprep.subr.mxu0 0.0
    %440 = vmatpush1.msra.mxu0 0.0
    %441 = vmatprep.subr.mxu0 0.0
    %442 = vmatpush1.msra.mxu0 0.0
    %443 = vmatprep.subr.mxu0 0.0
    %444 = vmatpush1.msra.mxu0 0.0
    %445 = vmatprep.subr.mxu0 0.0
    %446 = vmatpush1.msra.mxu0 0.0
    %447 = vmatprep.subr.mxu0 0.0
    %448 = vmatpush1.msra.mxu0 0.0
    %449 = vmatprep.subr.mxu0 0.0
    %450 = vmatpush1.msra.mxu0 0.0
    %451 = vmatprep.subr.mxu0 0.0
    %452 = vmatpush1.msra.mxu0 0.0
    %453 = vmatprep.subr.mxu0 0.0
    %454 = vmatpush1.msra.mxu0 0.0
    %455 = vmatprep.subr.mxu0 0.0
    %456 = vmatpush1.msra.mxu0 0.0
    %457 = vmatprep.subr.mxu0 0.0
    %458 = vmatpush1.msra.mxu0 0.0
    %459 = vmatprep.mubr.f32.mxu0 0.0
    %460 = vmatmul.mubr.f32.gmra.mrb[0].mxu0 %v70
    %v461 = vpop.f32.mrb[0].mxu0
    %v462 = vadd.f32 %v66, %v461
    %v463 = vpop.f32.mrb[0].mxu0
    %v464 = vadd.f32 %v66, %v463
    %465 = vdwg.mxu0
    %vm466 = vcmp.gt.f32.partialorder %v462, 0.0
    %vm467 = vcmp.gt.f32.partialorder %v464, 0.0
    %v468 = vmul.f32 %v462, 0.1
    %v469 = vmul.f32 %v464, 0.1
    %v470 = vsel %vm466, %v462, %v468
    %v471 = vsel %vm467, %v464, %v469
    %472 = vrot.lane.b32.xlu0 %v470, 1
    %v473 = vpop.permute.xlu0 %472
    %474 = vrot.lane.b32.xlu0 %v471, 1
    %v475 = vpop.permute.xlu0 %474
    %v476 = vsel %vm155, %v473, %v475
    %v477 = vsel %vm155, %v475, %v473
    %v478 = vmul.f32 %v477, %v162
    %v479 = vmul.f32 %v476, %v166
    %480 = vrot.lane.b32.xlu0 %v470, 127
    %v481 = vpop.permute.xlu0 %480
    %482 = vrot.lane.b32.xlu0 %v471, 127
    %v483 = vpop.permute.xlu0 %482
    %v484 = vsel %vm175, %v481, %v483
    %v485 = vsel %vm175, %v483, %v481
    %v486 = vmul.f32 %v484, %v182
    %v487 = vmul.f32 %v485, %v186
    %488 = vrot.lane.b32.xlu0 %v478, 16
    %v489 = vpop.permute.xlu0 %488
    %490 = vrot.lane.b32.xlu0 %v479, 16
    %v491 = vpop.permute.xlu0 %490
    %v492 = vsel %vm195, %v489, %v491
    %v493 = vsel %vm195, %v491, %v489
    %v494 = vmul.f32 %v493, %v202
    %v495 = vmul.f32 %v492, %v206
    %496 = vrot.lane.b32.xlu0 %v470, 16
    %v497 = vpop.permute.xlu0 %496
    %498 = vrot.lane.b32.xlu0 %v471, 16
    %v499 = vpop.permute.xlu0 %498
    %v500 = vsel %vm195, %v497, %v499
    %v501 = vsel %vm195, %v499, %v497
    %v502 = vmul.f32 %v501, %v202
    %v503 = vmul.f32 %v500, %v206
    %504 = vrot.lane.b32.xlu0 %v486, 16
    %v505 = vpop.permute.xlu0 %504
    %506 = vrot.lane.b32.xlu0 %v487, 16
    %v507 = vpop.permute.xlu0 %506
    %v508 = vsel %vm195, %v505, %v507
    %v509 = vsel %vm195, %v507, %v505
    %v510 = vmul.f32 %v509, %v202
    %v511 = vmul.f32 %v508, %v206
    %512 = vrot.lane.b32.xlu0 %v478, 112
    %v513 = vpop.permute.xlu0 %512
    %514 = vrot.lane.b32.xlu0 %v479, 112
    %v515 = vpop.permute.xlu0 %514
    %v516 = vsel %vm231, %v513, %v515
    %v517 = vsel %vm231, %v515, %v513
    %v518 = vmul.f32 %v516, %v238
    %v519 = vmul.f32 %v517, %v242
    %520 = vrot.lane.b32.xlu0 %v470, 112
    %v521 = vpop.permute.xlu0 %520
    %522 = vrot.lane.b32.xlu0 %v471, 112
    %v523 = vpop.permute.xlu0 %522
    %v524 = vsel %vm231, %v521, %v523
    %v525 = vsel %vm231, %v523, %v521
    %v526 = vmul.f32 %v524, %v238
    %v527 = vmul.f32 %v525, %v242
    %528 = vrot.lane.b32.xlu0 %v486, 112
    %v529 = vpop.permute.xlu0 %528
    %530 = vrot.lane.b32.xlu0 %v487, 112
    %v531 = vpop.permute.xlu0 %530
    %v532 = vsel %vm231, %v529, %v531
    %v533 = vsel %vm231, %v531, %v529
    %v534 = vmul.f32 %v532, %v238
    %v535 = vmul.f32 %v533, %v242
    %v538 = vrot.slane %v502, 4
    %v539 = vrot.slane %v503, 4
    %v544 = vrot.slane %v478, 4
    %v545 = vrot.slane %v479, 4
    %v550 = vrot.slane %v486, 4
    %v551 = vrot.slane %v487, 4
    %v556 = vrot.slane %v526, 4
    %v557 = vrot.slane %v527, 4
    %v560 = vsel %vm287, %v494, %v538
    %v561 = vsel %vm287, %v495, %v539
    %v562 = vsel %vm287, %v510, %v544
    %v563 = vsel %vm287, %v511, %v545
    %v564 = vsel %vm287, %v470, %v550
    %v565 = vsel %vm287, %v471, %v551
    %v566 = vsel %vm287, %v518, %v556
    %v567 = vsel %vm287, %v519, %v557
    %v569 = vsel %vm287, %v534, 0
    %v572 = vsel %vm287, %v535, 0
    %574 = vmatprep.subr.mxu0 %v561
    %575 = vmatpush1.msra.mxu0 %v560
    %576 = vmatprep.subr.mxu0 %v563
    %577 = vmatpush1.msra.mxu0 %v562
    %578 = vmatprep.subr.mxu0 %v565
    %579 = vmatpush1.msra.mxu0 %v564
    %580 = vmatprep.subr.mxu0 %v567
    %581 = vmatpush1.msra.mxu0 %v566
    %582 = vmatprep.subr.mxu0 %v572
    %583 = vmatpush1.msra.mxu0 %v569
    %584 = vmatprep.subr.mxu0 0.0
    %585 = vmatpush1.msra.mxu0 0.0
    %586 = vmatprep.subr.mxu0 0.0
    %587 = vmatpush1.msra.mxu0 0.0
    %588 = vmatprep.subr.mxu0 0.0
    %589 = vmatpush1.msra.mxu0 0.0
    %590 = vmatprep.subr.mxu0 0.0
    %591 = vmatpush1.msra.mxu0 0.0
    %592 = vmatprep.subr.mxu0 0.0
    %593 = vmatpush1.msra.mxu0 0.0
    %594 = vmatprep.subr.mxu0 0.0
    %595 = vmatpush1.msra.mxu0 0.0
    %596 = vmatprep.subr.mxu0 0.0
    %597 = vmatpush1.msra.mxu0 0.0
    %598 = vmatprep.subr.mxu0 0.0
    %599 = vmatpush1.msra.mxu0 0.0
    %600 = vmatprep.subr.mxu0 0.0
    %601 = vmatpush1.msra.mxu0 0.0
    %602 = vmatprep.subr.mxu0 0.0
    %603 = vmatpush1.msra.mxu0 0.0
    %604 = vmatprep.subr.mxu0 0.0
    %605 = vmatpush1.msra.mxu0 0.0
    %606 = vmatprep.subr.mxu0 0.0
    %607 = vmatpush1.msra.mxu0 0.0
    %608 = vmatprep.subr.mxu0 0.0
    %609 = vmatpush1.msra.mxu0 0.0
    %610 = vmatprep.subr.mxu0 0.0
    %611 = vmatpush1.msra.mxu0 0.0
    %612 = vmatprep.subr.mxu0 0.0
    %613 = vmatpush1.msra.mxu0 0.0
    %614 = vmatprep.subr.mxu0 0.0
    %615 = vmatpush1.msra.mxu0 0.0
    %616 = vmatprep.subr.mxu0 0.0
    %617 = vmatpush1.msra.mxu0 0.0
    %618 = vmatprep.subr.mxu0 0.0
    %619 = vmatpush1.msra.mxu0 0.0
    %620 = vmatprep.subr.mxu0 0.0
    %621 = vmatpush1.msra.mxu0 0.0
    %622 = vmatprep.subr.mxu0 0.0
    %623 = vmatpush1.msra.mxu0 0.0
    %624 = vmatprep.subr.mxu0 0.0
    %625 = vmatpush1.msra.mxu0 0.0
    %626 = vmatprep.subr.mxu0 0.0
    %627 = vmatpush1.msra.mxu0 0.0
    %628 = vmatprep.subr.mxu0 0.0
    %629 = vmatpush1.msra.mxu0 0.0
    %630 = vmatprep.subr.mxu0 0.0
    %631 = vmatpush1.msra.mxu0 0.0
    %632 = vmatprep.subr.mxu0 0.0
    %633 = vmatpush1.msra.mxu0 0.0
    %634 = vmatprep.subr.mxu0 0.0
    %635 = vmatpush1.msra.mxu0 0.0
    %636 = vmatprep.subr.mxu0 0.0
    %637 = vmatpush1.msra.mxu0 0.0
    %638 = vmatprep.mubr.f32.mxu0 0.0
    %639 = vmatmul.mubr.f32.gmra.mrb[0].mxu0 %v303
    %v640 = vpop.f32.mrb[0].mxu0
    %v641 = vadd.f32 %v299, %v640
    %v642 = vpop.f32.mrb[0].mxu0
    %v643 = vadd.f32 %v299, %v642
    %644 = vdwg.mxu0
    %vm645 = vcmp.gt.f32.partialorder %v641, 0.0
    %vm646 = vcmp.gt.f32.partialorder %v643, 0.0
    %v647 = vmul.f32 %v641, 0.1
    %v648 = vmul.f32 %v643, 0.1
    %v649 = vsel %vm645, %v641, %v647
    %v650 = vsel %vm646, %v643, %v648
    %v651 = vadd.f32 %v649, %v393
    %v652 = vadd.f32 %v650, %v394
    %s653 = scalar_lea.vmem [#allocation7], 16
    %654 = vst [vmem:[%s653] sm:$0xff] %v651
    %655 = vst [vmem:[%s653 + $0x8] sm:$0xff] %v652
    // Predicated region
    $region34: #{tpu_custom_call.1} parent=1 // pred_check
      _
    $region35: #{tpu_custom_call.1} parent=1 // pred_check_branch
      %657 = sbr.rel (0) target = $region37
    $region36: #{tpu_custom_call.1} parent=1 // pred_region
      %s659 = ssub.s32 512, 512
      %660 = vsyncadd [#allocation4], %s659
      %s661 = sshll.u32 [#allocation7], 4
      %s662 = int_to_ptr.vmem [resolvable:$true] %s661
      %667 = dma.vmem_to_hbm [thread:$0]  %s662, 512, %s6, [#allocation4], 256, 256, 16
    $region37: #{tpu_custom_call.1} parent=1 // pred_fallthru
      _
    // Predicated region
    $region38: #{tpu_custom_call.1} parent=1 // pred_check
      _
    $region39: #{tpu_custom_call.1} parent=1 // pred_check_branch
      %669 = sbr.rel (0) target = $region41
    $region40: #{tpu_custom_call.1} parent=1 // pred_region
      %670 = dma.done [#allocation4], 512
    $region41: #{tpu_custom_call.1} parent=1 // pred_fallthru
      _
    %671 = vsyncpa [#allocation3], 1
    %672 = vsyncpa [#allocation6], 1
    %673 = vsyncpa [#allocation4], 1

</llo_original>
